<compile_context>
chip_gen: v6e
topology: v6e:2x2x1
jax: 0.10.0
libtpu: 0.0.40
codegen_flags: <defaults>
</compile_context>

<pallas_src>
import functools

import jax
import jax.numpy as jnp
from jax.experimental import pallas as pl
from jax.experimental.pallas import tpu as pltpu

LANE = 128            # vreg lane width
SUBLANE = 8           # f32 vreg sublane count
MAX_TILE_ROWS = 4096  # rows per input block (~2 MiB f32) -> 4 in x 2 buf = 16 MiB VMEM
SMALL_PROBLEM_ELEMENTS = 64 * 1024   # below this, plain XLA wins


def _round_up(x: int, m: int) -> int:
    return -(-x // m) * m


def _row_align(*arrays) -> int:
    """Sublane multiple required by the narrowest dtype among the inputs."""
    align = SUBLANE
    for a in arrays:
        itemsize = jnp.dtype(a.dtype).itemsize
        align = max(align, SUBLANE * max(1, 4 // itemsize))
    return align


def _to_slab(x, rows: int):
    """Flatten x and zero-pad into a lane-dense (rows, 128) slab (same dtype)."""
    flat = x.reshape(-1)
    pad = rows * LANE - flat.shape[0]
    if pad:
        flat = jnp.pad(flat, (0, pad))
    return flat.reshape(rows, LANE)


def _mae_partial_kernel(pf_ref, tf_ref, pt_ref, tt_ref, out_ref, *,
                        inv_n_force, inv_n_torque):
    """One force tile + one torque tile -> weighted (8, 128) partial sum."""
    df = jnp.abs(pf_ref[...].astype(jnp.float32) -
                 tf_ref[...].astype(jnp.float32))        # (tile_rows, 128)
    dt = jnp.abs(pt_ref[...].astype(jnp.float32) -
                 tt_ref[...].astype(jnp.float32))        # (tile_rows, 128)

    rows, lane = df.shape
    # Sublane-preserving, vreg-aligned partial reduce: (tile_rows,128) -> (8,128).
    pf_partial = jnp.sum(df.reshape(rows // SUBLANE, SUBLANE, lane), axis=0)
    pt_partial = jnp.sum(dt.reshape(rows // SUBLANE, SUBLANE, lane), axis=0)

    out_ref[...] = (jnp.float32(inv_n_force) * pf_partial +
                    jnp.float32(inv_n_torque) * pt_partial)


def mae_loss_ref(pred_force, target_force, pred_torque, target_torque):
    return (
        jnp.mean(jnp.abs(pred_force - target_force))
        + jnp.mean(jnp.abs(pred_torque - target_torque))
    ).astype(jnp.float32)


def mae_loss(pred_force, target_force, pred_torque, target_torque, *,
             min_pallas_elements: int = SMALL_PROBLEM_ELEMENTS):
    """Pallas-backed equivalent of MAELoss.forward. Returns a float32 scalar."""
    assert pred_force.shape == target_force.shape
    assert pred_torque.shape == target_torque.shape
    n_f = int(pred_force.size)
    n_t = int(pred_torque.size)

    # Small-problem / degenerate bypass: XLA fuses this into one tiny kernel.
    if n_f == 0 or n_t == 0 or (n_f + n_t) < min_pallas_elements:
        return mae_loss_ref(pred_force, target_force, pred_torque, target_torque)

    # --- tile sizing --------------------------------------------------------
    row_align = _row_align(pred_force, target_force, pred_torque, target_torque)
    rows_needed = max(-(-n_f // LANE), -(-n_t // LANE), 1)
    # Aim for >= 2 grid steps (megacore on v7x), cap block at ~2 MiB f32.
    tile_rows = min(
        _round_up(MAX_TILE_ROWS, row_align),
        _round_up(-(-rows_needed // 2), row_align),
    )
    rows = _round_up(rows_needed, tile_rows)
    num_tiles = rows // tile_rows

    # --- lane-dense slabs (no concat, kept in HBM dtype) --------------------
    pf_slab = _to_slab(pred_force, rows)
    tf_slab = _to_slab(target_force, rows)
    pt_slab = _to_slab(pred_torque, rows)
    tt_slab = _to_slab(target_torque, rows)

    kernel = functools.partial(
        _mae_partial_kernel,
        inv_n_force=1.0 / n_f,
        inv_n_torque=1.0 / n_t,
    )

    tile_spec = lambda i: (i, 0)
    partials = pl.pallas_call(
        kernel,
        out_shape=jax.ShapeDtypeStruct((num_tiles * SUBLANE, LANE), jnp.float32),
        grid_spec=pltpu.PrefetchScalarGridSpec(
            num_scalar_prefetch=0,
            grid=(num_tiles,),
            in_specs=[
                pl.BlockSpec((tile_rows, LANE), tile_spec),
                pl.BlockSpec((tile_rows, LANE), tile_spec),
                pl.BlockSpec((tile_rows, LANE), tile_spec),
                pl.BlockSpec((tile_rows, LANE), tile_spec),
            ],
            out_specs=pl.BlockSpec((SUBLANE, LANE), tile_spec),
        ),
        compiler_params=pltpu.CompilerParams(
            dimension_semantics=("parallel",),   # independent tiles -> megacore-friendly
            vmem_limit_bytes=32 * 1024 * 1024,   # 16 MiB of block buffers + headroom
        ),
    )(pf_slab, tf_slab, pt_slab, tt_slab)

    # Tiny second-pass reduce (num_tiles*8 x 128 f32) done by XLA.
    return jnp.sum(partials)


if __name__ == "__main__":
    key = jax.random.PRNGKey(0)
    keys = jax.random.split(key, 12)

    # Case 1: module's natural small size (bypass path).
    n1 = 16
    pf = jax.random.normal(keys[0], (n1, 3), dtype=jnp.float32)
    tf = jax.random.normal(keys[1], (n1, 3), dtype=jnp.float32)
    pt = jax.random.normal(keys[2], (n1, 3), dtype=jnp.float32)
    tt = jax.random.normal(keys[3], (n1, 3), dtype=jnp.float32)
    loss1 = jax.block_until_ready(mae_loss(pf, tf, pt, tt))
    ref1 = mae_loss_ref(pf, tf, pt, tt)
    assert jnp.allclose(loss1, ref1, atol=1e-5, rtol=1e-5), (loss1, ref1)

    # Case 2: medium N, Pallas path forced (exercises ragged padding + 2-tile grid).
    n2 = 3000
    pf2 = jax.random.normal(keys[4], (n2, 3), dtype=jnp.float32)
    tf2 = jax.random.normal(keys[5], (n2, 3), dtype=jnp.float32)
    pt2 = jax.random.normal(keys[6], (n2, 3), dtype=jnp.float32)
    tt2 = jax.random.normal(keys[7], (n2, 3), dtype=jnp.float32)
    loss2 = jax.block_until_ready(
        mae_loss(pf2, tf2, pt2, tt2, min_pallas_elements=0))
    ref2 = mae_loss_ref(pf2, tf2, pt2, tt2)
    assert jnp.allclose(loss2, ref2, atol=1e-5, rtol=1e-5), (loss2, ref2)

    # Case 3: larger N, natural Pallas path (above the small-problem threshold).
    n3 = 100_000
    pf3 = jax.random.normal(keys[8], (n3, 3), dtype=jnp.float32)
    tf3 = jax.random.normal(keys[9], (n3, 3), dtype=jnp.float32)
    pt3 = jax.random.normal(keys[10], (n3, 3), dtype=jnp.float32)
    tt3 = jax.random.normal(keys[11], (n3, 3), dtype=jnp.float32)
    loss3 = jax.block_until_ready(mae_loss(pf3, tf3, pt3, tt3))
    ref3 = mae_loss_ref(pf3, tf3, pt3, tt3)
    assert jnp.allclose(loss3, ref3, atol=1e-4, rtol=1e-4), (loss3, ref3)

    print("KERNEL_OK")
</pallas_src>

<mosaic_0001>
module attributes {stable_mosaic.version = 11 : i64} {
  func.func @_mae_partial_kernel(%arg0: i32, %arg1: memref<40x128xf32, #tpu.memory_space<vmem>>, %arg2: memref<40x128xf32, #tpu.memory_space<vmem>>, %arg3: memref<40x128xf32, #tpu.memory_space<vmem>>, %arg4: memref<40x128xf32, #tpu.memory_space<vmem>>, %arg5: memref<8x128xf32, #tpu.memory_space<vmem>>) attributes {dimension_semantics = [#tpu.dimension_semantics<parallel>], iteration_bounds = array<i64: 2>, scalar_prefetch = 0 : i64, scratch_operands = 0 : i64, tpu.core_type = #tpu.core_type<tc>, window_params = [{transform_indices = @transform_0, window_bounds = array<i64: 40, 128>}, {transform_indices = @transform_1, window_bounds = array<i64: 40, 128>}, {transform_indices = @transform_2, window_bounds = array<i64: 40, 128>}, {transform_indices = @transform_3, window_bounds = array<i64: 40, 128>}, {transform_indices = @transform_4, window_bounds = array<i64: 8, 128>}]} {
    %c0 = arith.constant 0 : index
    %c0_0 = arith.constant 0 : index
    %0 = vector.load %arg1[%c0, %c0_0] : memref<40x128xf32, #tpu.memory_space<vmem>>, vector<40x128xf32>
    %c0_1 = arith.constant 0 : index
    %c0_2 = arith.constant 0 : index
    %1 = vector.load %arg2[%c0_1, %c0_2] : memref<40x128xf32, #tpu.memory_space<vmem>>, vector<40x128xf32>
    %2 = arith.subf %0, %1 : vector<40x128xf32>
    %3 = math.absf %2 : vector<40x128xf32>
    %c0_3 = arith.constant 0 : index
    %c0_4 = arith.constant 0 : index
    %4 = vector.load %arg3[%c0_3, %c0_4] : memref<40x128xf32, #tpu.memory_space<vmem>>, vector<40x128xf32>
    %c0_5 = arith.constant 0 : index
    %c0_6 = arith.constant 0 : index
    %5 = vector.load %arg4[%c0_5, %c0_6] : memref<40x128xf32, #tpu.memory_space<vmem>>, vector<40x128xf32>
    %6 = arith.subf %4, %5 : vector<40x128xf32>
    %7 = math.absf %6 : vector<40x128xf32>
    %8 = vector.shape_cast %3 : vector<40x128xf32> to vector<5x8x128xf32>
    %cst = arith.constant dense<0.000000e+00> : vector<8x128xf32>
    %9 = vector.multi_reduction <add>, %8, %cst [0] : vector<5x8x128xf32> to vector<8x128xf32>
    %10 = vector.shape_cast %7 : vector<40x128xf32> to vector<5x8x128xf32>
    %cst_7 = arith.constant dense<0.000000e+00> : vector<8x128xf32>
    %11 = vector.multi_reduction <add>, %10, %cst_7 [0] : vector<5x8x128xf32> to vector<8x128xf32>
    %cst_8 = arith.constant 1.11111112E-4 : f32
    %12 = vector.broadcast %cst_8 : f32 to vector<8x128xf32>
    %13 = arith.mulf %12, %9 : vector<8x128xf32>
    %cst_9 = arith.constant 1.11111112E-4 : f32
    %14 = vector.broadcast %cst_9 : f32 to vector<8x128xf32>
    %15 = arith.mulf %14, %11 : vector<8x128xf32>
    %16 = arith.addf %13, %15 : vector<8x128xf32>
    %c0_10 = arith.constant 0 : index
    %c0_11 = arith.constant 0 : index
    %17 = vector.load %arg5[%c0_10, %c0_11] : memref<8x128xf32, #tpu.memory_space<vmem>>, vector<8x128xf32>
    tpu.vector_store %arg5[%c0_10, %c0_11], %16 {strides = array<i32>} : memref<8x128xf32, #tpu.memory_space<vmem>>, vector<8x128xf32>,
    return
  }
  func.func @transform_0(%arg0: i32) -> (i32, i32) {
    %c0_i32 = arith.constant 0 : i32
    %c0_i32_0 = arith.constant 0 : i32
    return %arg0, %c0_i32 : i32, i32
  }
  func.func @transform_1(%arg0: i32) -> (i32, i32) {
    %c0_i32 = arith.constant 0 : i32
    %c0_i32_0 = arith.constant 0 : i32
    return %arg0, %c0_i32 : i32, i32
  }
  func.func @transform_2(%arg0: i32) -> (i32, i32) {
    %c0_i32 = arith.constant 0 : i32
    %c0_i32_0 = arith.constant 0 : i32
    return %arg0, %c0_i32 : i32, i32
  }
  func.func @transform_3(%arg0: i32) -> (i32, i32) {
    %c0_i32 = arith.constant 0 : i32
    %c0_i32_0 = arith.constant 0 : i32
    return %arg0, %c0_i32 : i32, i32
  }
  func.func @transform_4(%arg0: i32) -> (i32, i32) {
    %c0_i32 = arith.constant 0 : i32
    %c0_i32_0 = arith.constant 0 : i32
    return %arg0, %c0_i32 : i32, i32
  }
}

</mosaic_0001>

<llo_original>
// kernel: tpu_custom_call.1
$region0: #{tpu_custom_call.1}
  #allocation0 [shape = 'u32[]', space=smem, size = 0x4, offset = 0x4, fixed_abs, tag = 'smem constant byte address 0x4 - core index']
  #allocation1 [shape = 'u32[144,128]{1,0:T(1,128)}', space=vmem, size = 0x12000, scoped, tag = 'internal scratch']
  %s0 = inlined_call_operand.hbm [shape: f32[80,128], index: 0, kind: input, shape index: {}]
  %s1 = inlined_call_operand.hbm [shape: f32[80,128], index: 1, kind: input, shape index: {}]
  %s2 = inlined_call_operand.hbm [shape: f32[80,128], index: 2, kind: input, shape index: {}]
  %s3 = inlined_call_operand.hbm [shape: f32[80,128], index: 3, kind: input, shape index: {}]
  %s4 = inlined_call_operand.hbm [shape: f32[16,128], index: 4, kind: output, shape index: {}]
  %s5 = sld [smem:[#allocation0]]
  $region65: #{tpu_custom_call.1} parent=0
    _
  %s7 = ssub.s32 1, %s5
  %s8 = scalar_select 0, %s7, %s5
  $region1: #{tpu_custom_call.1} parent=0
    #allocation2 [shape = 'u8[40960]{0}', space=vmem, size = 0xa000, scoped, tag = 'input window, operand 0']
    #allocation3 [shape = 's32[2]{0}', space=sflag, size = 0x8, scoped, tag = 'scoped memory for tpu_custom_call.1']
    #allocation4 [shape = 's32[2]{0}', space=sflag, size = 0x8, scoped, tag = 'scoped memory for tpu_custom_call.1']
    #allocation5 [shape = 'u8[40960]{0}', space=vmem, size = 0xa000, scoped, tag = 'input window, operand 1']
    #allocation6 [shape = 's32[2]{0}', space=sflag, size = 0x8, scoped, tag = 'scoped memory for tpu_custom_call.1']
    #allocation7 [shape = 'u8[40960]{0}', space=vmem, size = 0xa000, scoped, tag = 'input window, operand 2']
    #allocation8 [shape = 'u8[40960]{0}', space=vmem, size = 0xa000, scoped, tag = 'input window, operand 3']
    #allocation9 [shape = 's32[2]{0}', space=sflag, size = 0x8, scoped, tag = 'scoped memory for tpu_custom_call.1']
    #allocation10 [shape = 'u8[8192]{0}', space=vmem, size = 0x2000, scoped, tag = 'output window, operand 0']
    %9 = vsyncpa [#allocation3], 0
    %s10 = scalar_lea.sflag [#allocation3], 1
    %11 = vsyncpa %s10, 0
    %12 = vsyncpa [#allocation6], 0
    %s13 = scalar_lea.sflag [#allocation6], 1
    %14 = vsyncpa %s13, 0
    %15 = vsyncpa [#allocation9], 0
    %s16 = scalar_lea.sflag [#allocation9], 1
    %17 = vsyncpa %s16, 0
    %18 = vsyncpa [#allocation4], 0
    %s19 = scalar_lea.sflag [#allocation4], 1
    %20 = vsyncpa %s19, 0
    loop: start=0, step=1, limit=4
    $region2: #{tpu_custom_call.1} parent=1 // loop_pre_header
      _
    $region3: #{tpu_custom_call.1} parent=1 // loop_header
      %s22 = sphi 0, %s26
      %p23 = scmp.ge.s32.totalorder %s22, 4
      %s32 = sphi 0, %s34
      %s35 = sphi 0, %s32
      %s36 = sphi 0, %s35
      %s52 = sphi 0, %s36
      %s58 = sphi 0, %s60
      %s61 = sphi 0, %s58
      %s62 = sphi 0, %s61
      %s78 = sphi 0, %s62
      %s84 = sphi 0, %s86
      %s87 = sphi 0, %s84
      %s88 = sphi 0, %s87
      %s104 = sphi 0, %s88
      %s110 = sphi 0, %s112
      %s113 = sphi 0, %s110
      %s114 = sphi 0, %s113
      %s130 = sphi 0, %s114
      %s136 = sphi 0, %s138
      %s139 = sphi 0, %s136
      %s140 = sphi 0, %s139
      %s156 = sphi 0, %s140
    $region4: #{tpu_custom_call.1} parent=1 // loop_header_branch
      %25 = sbr.rel (%p23) target = $region8
    $region5: #{tpu_custom_call.1} parent=1 // loop_body
      %s27 = ssub.s32 %s22, 1
      %s28 = ssub.s32 %s22, 2
      %s29 = sadd.s32 %s22, 1
      %s30 = ssub.s32 %s22, %s29
      %p31 = scmp.eq.s32.totalorder %s30, 0
      %s33 = sadd.s32 %s32, 1
      %s34 = scalar_select %p31, %s32, %s33
      %p37 = pneg %p31
      %p38 = scmp.eq.s32.totalorder %s22, 1
      %p39 = por %p37, %p38
      %p40 = scmp.ne.s32.totalorder %s32, %s35
      %p41 = scmp.eq.s32.totalorder %s22, 0
      %p42 = por %p40, %p41
      %p43 = scmp.ne.s32.totalorder %s32, %s35
      %p44 = scmp.eq.s32.totalorder %s27, 1
      %p45 = por %p43, %p44
      %p46 = scmp.ne.s32.totalorder %s35, %s36
      %p47 = scmp.eq.s32.totalorder %s27, 0
      %p48 = por %p46, %p47
      %p49 = scmp.ne.s32.totalorder %s35, %s36
      %p50 = scmp.eq.s32.totalorder %s28, 1
      %p51 = por %p49, %p50
      %p53 = scmp.ne.s32.totalorder %s36, %s52
      %p54 = scmp.eq.s32.totalorder %s28, 0
      %p55 = por %p53, %p54
      %s56 = ssub.s32 %s22, %s29
      %p57 = scmp.eq.s32.totalorder %s56, 0
      %s59 = sadd.s32 %s58, 1
      %s60 = scalar_select %p57, %s58, %s59
      %p63 = pneg %p57
      %p64 = scmp.eq.s32.totalorder %s22, 1
      %p65 = por %p63, %p64
      %p66 = scmp.ne.s32.totalorder %s58, %s61
      %p67 = scmp.eq.s32.totalorder %s22, 0
      %p68 = por %p66, %p67
      %p69 = scmp.ne.s32.totalorder %s58, %s61
      %p70 = scmp.eq.s32.totalorder %s27, 1
      %p71 = por %p69, %p70
      %p72 = scmp.ne.s32.totalorder %s61, %s62
      %p73 = scmp.eq.s32.totalorder %s27, 0
      %p74 = por %p72, %p73
      %p75 = scmp.ne.s32.totalorder %s61, %s62
      %p76 = scmp.eq.s32.totalorder %s28, 1
      %p77 = por %p75, %p76
      %p79 = scmp.ne.s32.totalorder %s62, %s78
      %p80 = scmp.eq.s32.totalorder %s28, 0
      %p81 = por %p79, %p80
      %s82 = ssub.s32 %s22, %s29
      %p83 = scmp.eq.s32.totalorder %s82, 0
      %s85 = sadd.s32 %s84, 1
      %s86 = scalar_select %p83, %s84, %s85
      %p89 = pneg %p83
      %p90 = scmp.eq.s32.totalorder %s22, 1
      %p91 = por %p89, %p90
      %p92 = scmp.ne.s32.totalorder %s84, %s87
      %p93 = scmp.eq.s32.totalorder %s22, 0
      %p94 = por %p92, %p93
      %p95 = scmp.ne.s32.totalorder %s84, %s87
      %p96 = scmp.eq.s32.totalorder %s27, 1
      %p97 = por %p95, %p96
      %p98 = scmp.ne.s32.totalorder %s87, %s88
      %p99 = scmp.eq.s32.totalorder %s27, 0
      %p100 = por %p98, %p99
      %p101 = scmp.ne.s32.totalorder %s87, %s88
      %p102 = scmp.eq.s32.totalorder %s28, 1
      %p103 = por %p101, %p102
      %p105 = scmp.ne.s32.totalorder %s88, %s104
      %p106 = scmp.eq.s32.totalorder %s28, 0
      %p107 = por %p105, %p106
      %s108 = ssub.s32 %s22, %s29
      %p109 = scmp.eq.s32.totalorder %s108, 0
      %s111 = sadd.s32 %s110, 1
      %s112 = scalar_select %p109, %s110, %s111
      %p115 = pneg %p109
      %p116 = scmp.eq.s32.totalorder %s22, 1
      %p117 = por %p115, %p116
      %p118 = scmp.ne.s32.totalorder %s110, %s113
      %p119 = scmp.eq.s32.totalorder %s22, 0
      %p120 = por %p118, %p119
      %p121 = scmp.ne.s32.totalorder %s110, %s113
      %p122 = scmp.eq.s32.totalorder %s27, 1
      %p123 = por %p121, %p122
      %p124 = scmp.ne.s32.totalorder %s113, %s114
      %p125 = scmp.eq.s32.totalorder %s27, 0
      %p126 = por %p124, %p125
      %p127 = scmp.ne.s32.totalorder %s113, %s114
      %p128 = scmp.eq.s32.totalorder %s28, 1
      %p129 = por %p127, %p128
      %p131 = scmp.ne.s32.totalorder %s114, %s130
      %p132 = scmp.eq.s32.totalorder %s28, 0
      %p133 = por %p131, %p132
      %s134 = ssub.s32 %s22, %s29
      %p135 = scmp.eq.s32.totalorder %s134, 0
      %s137 = sadd.s32 %s136, 1
      %s138 = scalar_select %p135, %s136, %s137
      %p141 = pneg %p135
      %p142 = scmp.eq.s32.totalorder %s22, 1
      %p143 = por %p141, %p142
      %p144 = scmp.ne.s32.totalorder %s136, %s139
      %p145 = scmp.eq.s32.totalorder %s22, 0
      %p146 = por %p144, %p145
      %p147 = scmp.ne.s32.totalorder %s136, %s139
      %p148 = scmp.eq.s32.totalorder %s27, 1
      %p149 = por %p147, %p148
      %p150 = scmp.ne.s32.totalorder %s139, %s140
      %p151 = scmp.eq.s32.totalorder %s27, 0
      %p152 = por %p150, %p151
      %p153 = scmp.ne.s32.totalorder %s139, %s140
      %p154 = scmp.eq.s32.totalorder %s28, 1
      %p155 = por %p153, %p154
      %p157 = scmp.ne.s32.totalorder %s140, %s156
      %p158 = scmp.eq.s32.totalorder %s28, 0
      %p159 = por %p157, %p158
      %p160 = scmp.le.s32.totalorder 1, %s22
      %p161 = scmp.lt.s32.totalorder %s22, 3
      %p162 = pnand %p160, %p161
      %p163 = pneg %p162
      // Predicated region
      $region9: #{tpu_custom_call.1} parent=5 // pred_check
        _
      $region10: #{tpu_custom_call.1} parent=5 // pred_check_branch
        %165 = sbr.rel (%p162) target = $region12
      $region11: #{tpu_custom_call.1} parent=5 // pred_region
        %s166 = ssub.s32 %s22, 1
      $region12: #{tpu_custom_call.1} parent=5 // pred_fallthru
        _
      %p167 = scmp.lt.s32.totalorder %s22, 2
      // Predicated region
      $region13: #{tpu_custom_call.1} parent=5 // pred_check
        %p168 = pneg %p167
      $region14: #{tpu_custom_call.1} parent=5 // pred_check_branch
        %170 = sbr.rel (%p168) target = $region16
      $region15: #{tpu_custom_call.1} parent=5 // pred_region
        // Predicated region
        $region17: #{tpu_custom_call.1} parent=15 // pred_check
          %p171 = pneg %p42
        $region18: #{tpu_custom_call.1} parent=15 // pred_check_branch
          %173 = sbr.rel (%p171) target = $region20
        $region19: #{tpu_custom_call.1} parent=15 // pred_region
          %s174 = sand.u32 %s32, 1
          %s175 = scalar_lea.sflag [#allocation3], %s174
          %s176 = sand.u32 %s32, 1
          %s177 = smul.addr %s176, 40
          %s178 = scalar_lea.vmem [#allocation2], %s177
          %s179 = smul.u32 5, %s22
          %s181 = ssub.s32 640, 640
          %182 = vsyncadd %s175, %s181
          %s183 = smul.addr %s179, 128
          %s184 = scalar_lea.hbm %s0, %s183
          %s185 = sshll.u32 %s178, 4
          %s186 = int_to_ptr.vmem [resolvable:$true] %s185
          %191 = dma.hbm_to_vmem [thread:$0]  %s184, 640, %s186, %s175, 128, 128, 8
        $region20: #{tpu_custom_call.1} parent=15 // pred_fallthru
          _
        // Predicated region
        $region21: #{tpu_custom_call.1} parent=15 // pred_check
          %p192 = pneg %p68
        $region22: #{tpu_custom_call.1} parent=15 // pred_check_branch
          %194 = sbr.rel (%p192) target = $region24
        $region23: #{tpu_custom_call.1} parent=15 // pred_region
          %s195 = sand.u32 %s22, 1
          %s196 = scalar_lea.sflag [#allocation6], %s195
          %s197 = sand.u32 %s58, 1
          %s198 = smul.addr %s197, 40
          %s199 = scalar_lea.vmem [#allocation5], %s198
          %s200 = smul.u32 5, %s22
          %s202 = ssub.s32 640, 640
          %203 = vsyncadd %s196, %s202
          %s204 = smul.addr %s200, 128
          %s205 = scalar_lea.hbm %s1, %s204
          %s206 = sshll.u32 %s199, 4
          %s207 = int_to_ptr.vmem [resolvable:$true] %s206
          %212 = dma.hbm_to_vmem [thread:$0]  %s205, 640, %s207, %s196, 128, 128, 8
        $region24: #{tpu_custom_call.1} parent=15 // pred_fallthru
          _
        // Predicated region
        $region25: #{tpu_custom_call.1} parent=15 // pred_check
          %p213 = pneg %p94
        $region26: #{tpu_custom_call.1} parent=15 // pred_check_branch
          %215 = sbr.rel (%p213) target = $region28
        $region27: #{tpu_custom_call.1} parent=15 // pred_region
          %s216 = sand.u32 %s22, 1
          %s217 = scalar_lea.sflag [#allocation6], %s216
          %s218 = sand.u32 %s84, 1
          %s219 = smul.addr %s218, 40
          %s220 = scalar_lea.vmem [#allocation7], %s219
          %s221 = smul.u32 5, %s22
          %s223 = ssub.s32 640, 640
          %224 = vsyncadd %s217, %s223
          %s225 = smul.addr %s221, 128
          %s226 = scalar_lea.hbm %s2, %s225
          %s227 = sshll.u32 %s220, 4
          %s228 = int_to_ptr.vmem [resolvable:$true] %s227
          %233 = dma.hbm_to_vmem [thread:$0]  %s226, 640, %s228, %s217, 128, 128, 8
        $region28: #{tpu_custom_call.1} parent=15 // pred_fallthru
          _
        // Predicated region
        $region29: #{tpu_custom_call.1} parent=15 // pred_check
          %p234 = pneg %p120
        $region30: #{tpu_custom_call.1} parent=15 // pred_check_branch
          %236 = sbr.rel (%p234) target = $region32
        $region31: #{tpu_custom_call.1} parent=15 // pred_region
          %s237 = sand.u32 %s110, 1
          %s238 = scalar_lea.sflag [#allocation9], %s237
          %s239 = sand.u32 %s110, 1
          %s240 = smul.addr %s239, 40
          %s241 = scalar_lea.vmem [#allocation8], %s240
          %s242 = smul.u32 5, %s22
          %s244 = ssub.s32 640, 640
          %245 = vsyncadd %s238, %s244
          %s246 = smul.addr %s242, 128
          %s247 = scalar_lea.hbm %s3, %s246
          %s248 = sshll.u32 %s241, 4
          %s249 = int_to_ptr.vmem [resolvable:$true] %s248
          %254 = dma.hbm_to_vmem [thread:$0]  %s247, 640, %s249, %s238, 128, 128, 8
        $region32: #{tpu_custom_call.1} parent=15 // pred_fallthru
          _
      $region16: #{tpu_custom_call.1} parent=5 // pred_fallthru
        _
      %p255 = scmp.le.s32.totalorder 1, %s22
      %p256 = scmp.lt.s32.totalorder %s22, 3
      %p257 = pnand %p255, %p256
      %p258 = pneg %p257
      // Predicated region
      $region33: #{tpu_custom_call.1} parent=5 // pred_check
        _
      $region34: #{tpu_custom_call.1} parent=5 // pred_check_branch
        %260 = sbr.rel (%p257) target = $region36
      $region35: #{tpu_custom_call.1} parent=5 // pred_region
        %s261 = ssub.s32 %s22, 1
        %s262 = sand.u32 %s35, 1
        %s263 = scalar_lea.sflag [#allocation3], %s262
        %s264 = sand.u32 %s35, 1
        %s265 = smul.addr %s264, 40
        %s266 = scalar_lea.vmem [#allocation2], %s265
        // Predicated region
        $region37: #{tpu_custom_call.1} parent=35 // pred_check
          %p267 = pneg %p48
        $region38: #{tpu_custom_call.1} parent=35 // pred_check_branch
          %269 = sbr.rel (%p267) target = $region40
        $region39: #{tpu_custom_call.1} parent=35 // pred_region
          %270 = dma.done %s263, 640
        $region40: #{tpu_custom_call.1} parent=35 // pred_fallthru
          _
        %s271 = sand.u32 %s27, 1
        %s272 = scalar_lea.sflag [#allocation6], %s271
        %s273 = sand.u32 %s61, 1
        %s274 = smul.addr %s273, 40
        %s275 = scalar_lea.vmem [#allocation5], %s274
        // Predicated region
        $region41: #{tpu_custom_call.1} parent=35 // pred_check
          %p276 = pneg %p74
        $region42: #{tpu_custom_call.1} parent=35 // pred_check_branch
          %278 = sbr.rel (%p276) target = $region44
        $region43: #{tpu_custom_call.1} parent=35 // pred_region
          %279 = dma.done %s272, 640
        $region44: #{tpu_custom_call.1} parent=35 // pred_fallthru
          _
        %s280 = sand.u32 %s27, 1
        %s281 = scalar_lea.sflag [#allocation6], %s280
        %s282 = sand.u32 %s87, 1
        %s283 = smul.addr %s282, 40
        %s284 = scalar_lea.vmem [#allocation7], %s283
        // Predicated region
        $region45: #{tpu_custom_call.1} parent=35 // pred_check
          %p285 = pneg %p100
        $region46: #{tpu_custom_call.1} parent=35 // pred_check_branch
          %287 = sbr.rel (%p285) target = $region48
        $region47: #{tpu_custom_call.1} parent=35 // pred_region
          %288 = dma.done %s281, 640
        $region48: #{tpu_custom_call.1} parent=35 // pred_fallthru
          _
        %s289 = sand.u32 %s113, 1
        %s290 = scalar_lea.sflag [#allocation9], %s289
        %s291 = sand.u32 %s113, 1
        %s292 = smul.addr %s291, 40
        %s293 = scalar_lea.vmem [#allocation8], %s292
        // Predicated region
        $region49: #{tpu_custom_call.1} parent=35 // pred_check
          %p294 = pneg %p126
        $region50: #{tpu_custom_call.1} parent=35 // pred_check_branch
          %296 = sbr.rel (%p294) target = $region52
        $region51: #{tpu_custom_call.1} parent=35 // pred_region
          %297 = dma.done %s290, 640
        $region52: #{tpu_custom_call.1} parent=35 // pred_fallthru
          _
        %s298 = sand.u32 %s35, 1
        %s299 = scalar_lea.sflag [#allocation3], %s298
        %s300 = sand.u32 %s35, 1
        %s301 = smul.addr %s300, 40
        %s302 = scalar_lea.vmem [#allocation2], %s301
        %p303 = pneg %p48
        %p304 = pneg %p45
        %s305 = sand.u32 %s27, 1
        %s306 = scalar_lea.sflag [#allocation6], %s305
        %s307 = sand.u32 %s61, 1
        %s308 = smul.addr %s307, 40
        %s309 = scalar_lea.vmem [#allocation5], %s308
        %p310 = pneg %p74
        %p311 = pneg %p71
        %s312 = sand.u32 %s27, 1
        %s313 = scalar_lea.sflag [#allocation6], %s312
        %s314 = sand.u32 %s87, 1
        %s315 = smul.addr %s314, 40
        %s316 = scalar_lea.vmem [#allocation7], %s315
        %p317 = pneg %p100
        %p318 = pneg %p97
        %s319 = sand.u32 %s113, 1
        %s320 = scalar_lea.sflag [#allocation9], %s319
        %s321 = sand.u32 %s113, 1
        %s322 = smul.addr %s321, 40
        %s323 = scalar_lea.vmem [#allocation8], %s322
        %p324 = pneg %p126
        %p325 = pneg %p123
        %p326 = pneg %p152
        %p327 = pneg %p149
        %s328 = sand.u32 %s139, 1
        %s329 = scalar_lea.sflag [#allocation4], %s328
        %s330 = sand.u32 %s139, 1
        %s331 = smul.addr %s330, 8
        %s332 = scalar_lea.vmem [#allocation10], %s331
        %s333 = smul.u32 5, %s27
        %s334 = smul.u32 5, %s27
        %s335 = smul.u32 5, %s27
        %s336 = smul.u32 5, %s27
        %v337 = vld [vmem:[%s266] sm:$0xff]
        %v338 = vld [vmem:[%s266 + $0x8] sm:$0xff]
        %v339 = vld [vmem:[%s266 + $0x10] sm:$0xff]
        %v340 = vld [vmem:[%s266 + $0x18] sm:$0xff]
        %v341 = vld [vmem:[%s266 + $0x20] sm:$0xff]
        %v342 = vld [vmem:[%s275] sm:$0xff]
        %v343 = vld [vmem:[%s275 + $0x8] sm:$0xff]
        %v344 = vld [vmem:[%s275 + $0x10] sm:$0xff]
        %v345 = vld [vmem:[%s275 + $0x18] sm:$0xff]
        %v346 = vld [vmem:[%s275 + $0x20] sm:$0xff]
        %v347 = vsub.f32 %v337, %v342
        %v348 = vsub.f32 %v338, %v343
        %v349 = vsub.f32 %v339, %v344
        %v350 = vsub.f32 %v340, %v345
        %v351 = vsub.f32 %v341, %v346
        %v352 = vand.u32 2147483647, %v347
        %v353 = vand.u32 2147483647, %v348
        %v354 = vand.u32 2147483647, %v349
        %v355 = vand.u32 2147483647, %v350
        %v356 = vand.u32 2147483647, %v351
        %v357 = vld [vmem:[%s284] sm:$0xff]
        %v358 = vld [vmem:[%s284 + $0x8] sm:$0xff]
        %v359 = vld [vmem:[%s284 + $0x10] sm:$0xff]
        %v360 = vld [vmem:[%s284 + $0x18] sm:$0xff]
        %v361 = vld [vmem:[%s284 + $0x20] sm:$0xff]
        %v362 = vld [vmem:[%s293] sm:$0xff]
        %v363 = vld [vmem:[%s293 + $0x8] sm:$0xff]
        %v364 = vld [vmem:[%s293 + $0x10] sm:$0xff]
        %v365 = vld [vmem:[%s293 + $0x18] sm:$0xff]
        %v366 = vld [vmem:[%s293 + $0x20] sm:$0xff]
        %v367 = vsub.f32 %v357, %v362
        %v368 = vsub.f32 %v358, %v363
        %v369 = vsub.f32 %v359, %v364
        %v370 = vsub.f32 %v360, %v365
        %v371 = vsub.f32 %v361, %v366
        %v372 = vand.u32 2147483647, %v367
        %v373 = vand.u32 2147483647, %v368
        %v374 = vand.u32 2147483647, %v369
        %v375 = vand.u32 2147483647, %v370
        %v376 = vand.u32 2147483647, %v371
        %v377 = vadd.f32 %v352, %v353
        %v378 = vadd.f32 %v377, %v354
        %v379 = vadd.f32 %v378, %v355
        %v380 = vadd.f32 %v379, %v356
        %v381 = vadd.f32 %v372, %v373
        %v382 = vadd.f32 %v381, %v374
        %v383 = vadd.f32 %v382, %v375
        %v384 = vadd.f32 %v383, %v376
        %v385 = vmul.f32 %v380, 0.00011111111
        %v386 = vmul.f32 %v384, 0.00011111111
        %v387 = vadd.f32 %v385, %v386
        %388 = vst [vmem:[%s332] sm:$0xff] %v387
        %s389 = sand.u32 %s139, 1
        %s390 = scalar_lea.sflag [#allocation4], %s389
        %s391 = sand.u32 %s139, 1
        %s392 = smul.addr %s391, 8
        %s393 = scalar_lea.vmem [#allocation10], %s392
        // Predicated region
        $region53: #{tpu_custom_call.1} parent=35 // pred_check
          %p394 = pneg %p149
        $region54: #{tpu_custom_call.1} parent=35 // pred_check_branch
          %396 = sbr.rel (%p394) target = $region56
        $region55: #{tpu_custom_call.1} parent=35 // pred_region
          %s398 = ssub.s32 128, 128
          %399 = vsyncadd %s390, %s398
          %s400 = smul.addr %s27, 128
          %s401 = scalar_lea.hbm %s4, %s400
          %s403 = sshll.u32 %s393, 4
          %s404 = int_to_ptr.vmem [resolvable:$true] %s403
          %406 = dma.vmem_to_hbm [thread:$0]  %s404, 128, %s401, %s390
        $region56: #{tpu_custom_call.1} parent=35 // pred_fallthru
          _
      $region36: #{tpu_custom_call.1} parent=5 // pred_fallthru
        _
      %p407 = scmp.le.s32.totalorder 2, %s22
      // Predicated region
      $region57: #{tpu_custom_call.1} parent=5 // pred_check
        %p408 = pneg %p407
      $region58: #{tpu_custom_call.1} parent=5 // pred_check_branch
        %410 = sbr.rel (%p408) target = $region60
      $region59: #{tpu_custom_call.1} parent=5 // pred_region
        %s411 = ssub.s32 %s22, 2
        // Predicated region
        $region61: #{tpu_custom_call.1} parent=59 // pred_check
          %p412 = pneg %p155
        $region62: #{tpu_custom_call.1} parent=59 // pred_check_branch
          %414 = sbr.rel (%p412) target = $region64
        $region63: #{tpu_custom_call.1} parent=59 // pred_region
          %s415 = sand.u32 %s140, 1
          %s416 = scalar_lea.sflag [#allocation4], %s415
          %s417 = sand.u32 %s140, 1
          %s418 = smul.addr %s417, 8
          %s419 = scalar_lea.vmem [#allocation10], %s418
          %420 = dma.done %s416, 128
        $region64: #{tpu_custom_call.1} parent=59 // pred_fallthru
          _
      $region60: #{tpu_custom_call.1} parent=5 // pred_fallthru
        _
    $region6: #{tpu_custom_call.1} parent=1 // loop_footer
      %s26 = sadd.s32 1, %s22
    $region7: #{tpu_custom_call.1} parent=1 // loop_footer_branch
      %21 = sbr.rel target = $region3
    $region8: #{tpu_custom_call.1} parent=1 // loop_exit
      _
    %421 = vsyncpa [#allocation3], 1
    %s422 = scalar_lea.sflag [#allocation3], 1
    %423 = vsyncpa %s422, 1
    %424 = vsyncpa [#allocation6], 1
    %s425 = scalar_lea.sflag [#allocation6], 1
    %426 = vsyncpa %s425, 1
    %427 = vsyncpa [#allocation9], 1
    %s428 = scalar_lea.sflag [#allocation9], 1
    %429 = vsyncpa %s428, 1
    %430 = vsyncpa [#allocation4], 1
    %s431 = scalar_lea.sflag [#allocation4], 1
    %432 = vsyncpa %s431, 1

</llo_original>
